<compile_context>
chip_gen: v5e
topology: v5e:2x2
jax: 0.10.0
libtpu: 0.0.40
codegen_flags: <defaults>
</compile_context>

<pallas_src>
import jax
import jax.numpy as jnp
from jax.experimental import pallas as pl
from jax.experimental.pallas import tpu as pltpu


def transition_kernel(x_ref, scale_ref, bias_ref, w_ref, o_ref):
    # x_ref:     (4, Cin, T)  the four 2x2 pooling taps of this tile (bf16)
    # scale_ref: (Cin, 1)     folded BN scale * 0.25 (compute dtype)
    # bias_ref:  (Cin, 1)     folded BN bias  * 0.25 (compute dtype)
    # w_ref:     (Cout, Cin)  1x1 conv weight (bf16)
    # o_ref:     (Cout, T)    output tile (spatial on lanes -> lane-dense store)
    cin, t = x_ref.shape[1], x_ref.shape[2]

    # Hoist the lane-broadcast of scale/bias once (no CSE of broadcast_in_dim).
    s = jnp.broadcast_to(scale_ref[...], (cin, t))
    b = jnp.broadcast_to(bias_ref[...], (cin, t))

    x = x_ref[...]                                   # (4, Cin, T) bf16
    # BN + ReLU per tap; the 0.25 pool factor is folded into s/b, so the
    # 2x2 average pool is just a sum of the four taps.
    pooled = (jnp.maximum(x[0] * s + b, 0)
              + jnp.maximum(x[1] * s + b, 0)
              + jnp.maximum(x[2] * s + b, 0)
              + jnp.maximum(x[3] * s + b, 0))

    out = jnp.dot(w_ref[...], pooled.astype(jnp.bfloat16),   # MXU, f32 accum
                  preferred_element_type=jnp.float32)
    o_ref[...] = out.astype(o_ref.dtype)


def _vmem_budgets():
    """Generation-aware (x-block budget, vmem_limit_bytes)."""
    cap = 64 * 1024 * 1024
    try:
        info = pltpu.get_tpu_info()
        cap = int(getattr(info, "vmem_capacity_bytes", cap))
    except Exception:
        pass
    if cap >= 100 * 1024 * 1024:                      # v5e / v6e: 128 MiB VMEM
        return 24 * 1024 * 1024, 96 * 1024 * 1024
    return 8 * 1024 * 1024, 32 * 1024 * 1024          # v7x: 64 MiB per TC


def _use_bf16_vpu():
    """bf16 VALU exists on v6e/v7x; keep f32 elementwise math on <= v5."""
    try:
        kind = jax.devices()[0].device_kind.lower()
    except Exception:
        return True
    return not any(g in kind for g in ("v2", "v3", "v4", "v5"))


def _pick_spatial_tile(hwo_pad, cin, x_budget_bytes, x_itemsize):
    """Largest lane-dense tile T (multiple of 128, divisor of hwo_pad) whose
    double-buffered x block (2 * 4 * Cin * T * itemsize) fits the budget."""
    budget_elems = max(128, x_budget_bytes // (2 * 4 * cin * x_itemsize))
    target = max(128, min(4096, (budget_elems // 128) * 128))
    m = hwo_pad // 128
    best = 128
    for d in range(1, m + 1):
        if m % d == 0 and 128 * d <= target:
            best = 128 * d
    return best


def transition_forward(x_nchw, gamma, beta, running_mean, running_var, conv_w,
                       eps=1e-5, out_dtype=None):
    N, Cin, H, W = x_nchw.shape
    Cout = conv_w.shape[0]
    assert H % 2 == 0 and W % 2 == 0, "avg_pool2d(2) expects even spatial dims"
    Ho, Wo = H // 2, W // 2
    HWo = Ho * Wo
    out_dtype = x_nchw.dtype if out_dtype is None else out_dtype

    compute_dtype = jnp.bfloat16 if _use_bf16_vpu() else jnp.float32

    # Fold inference-mode BatchNorm and the 0.25 pool factor into per-channel
    # scale / bias:  0.25*relu(s*x + b) = relu(0.25*s*x + 0.25*b).
    scale = (gamma / jnp.sqrt(running_var + eps)).astype(jnp.float32)
    bias = (beta - running_mean * scale).astype(jnp.float32)
    scale2 = (0.25 * scale).reshape(Cin, 1).astype(compute_dtype)
    bias2 = (0.25 * bias).reshape(Cin, 1).astype(compute_dtype)

    # 1x1 conv weight as (Cout, Cin), bf16 for the MXU.
    w = conv_w[:, :, 0, 0].astype(jnp.bfloat16)

    # NCHW -> (N, 4, Cin, HWo) in ONE transpose pass with the bf16 downcast
    # fused in (halves transpose write + kernel read).  Tap index = 2*dh + dw
    # for input pixel (2i+dh, 2j+dw) of output pixel (i, j).  Kernel output is
    # already NCHW-flattened, so there is no output transpose at all.
    x_t = x_nchw.reshape(N, Cin, Ho, 2, Wo, 2)
    x_t = jnp.transpose(x_t, (0, 3, 5, 1, 2, 4)).reshape(N, 4, Cin, HWo)
    x_t = x_t.astype(jnp.bfloat16)

    # Pad HWo up to a multiple of 128: lane-dense unmasked stores, >=2 grid
    # steps, no full-HWo fallback.  Padding is sliced off after the call.
    HWo_pad = ((HWo + 127) // 128) * 128
    if HWo_pad != HWo:
        x_t = jnp.pad(x_t, ((0, 0), (0, 0), (0, 0), (0, HWo_pad - HWo)))

    x_budget, vmem_limit = _vmem_budgets()
    T = _pick_spatial_tile(HWo_pad, Cin, x_budget, 2)
    n_tiles = HWo_pad // T
    # Feed both v7x TensorCores even for N == 1.
    if N * n_tiles < 2 and T >= 256:
        T //= 2
        n_tiles = HWo_pad // T

    out_bytes = N * Cout * HWo_pad * jnp.dtype(out_dtype).itemsize
    cost = pl.CostEstimate(
        flops=2 * N * Cout * Cin * HWo_pad,
        transcendentals=0,
        bytes_accessed=x_t.size * 2 + out_bytes + w.size * 2
                       + scale2.size * 4 + bias2.size * 4,
    )

    out_flat = pl.pallas_call(
        transition_kernel,
        out_shape=jax.ShapeDtypeStruct((N, Cout, HWo_pad), out_dtype),
        grid=(N, n_tiles),
        in_specs=[
            pl.BlockSpec((None, 4, Cin, T), lambda n, t: (n, 0, 0, t)),
            pl.BlockSpec((Cin, 1), lambda n, t: (0, 0)),
            pl.BlockSpec((Cin, 1), lambda n, t: (0, 0)),
            pl.BlockSpec((Cout, Cin), lambda n, t: (0, 0)),
        ],
        out_specs=pl.BlockSpec((None, Cout, T), lambda n, t: (n, 0, t)),
        compiler_params=pltpu.CompilerParams(
            dimension_semantics=("parallel", "parallel"),
            vmem_limit_bytes=vmem_limit,
        ),
        cost_estimate=cost,
    )(x_t, scale2, bias2, w)

    # Strip spatial padding; (N, Cout, HWo) is already NCHW -> pure reshape.
    return out_flat[:, :, :HWo].reshape(N, Cout, Ho, Wo)


def transition_reference(x, gamma, beta, rm, rv, conv_w, eps=1e-5):
    """Plain-JAX f32 reference of the same (inference-mode) forward pass."""
    xn = (x - rm[None, :, None, None]) / jnp.sqrt(rv[None, :, None, None] + eps)
    xn = xn * gamma[None, :, None, None] + beta[None, :, None, None]
    xn = jnp.maximum(xn, 0.0)
    z = jnp.einsum('nchw,oc->nohw', xn, conv_w[:, :, 0, 0])
    N, Co, H, W = z.shape
    return z.reshape(N, Co, H // 2, 2, W // 2, 2).mean(axis=(3, 5))


if __name__ == "__main__":
    key = jax.random.PRNGKey(0)
    k_x, k_w, k_g, k_b, k_m, k_v = jax.random.split(key, 6)

    N, Cin, Cout, H, W = 2, 4, 8, 16, 16

    x = jax.random.normal(k_x, (N, Cin, H, W), jnp.float32)

    # Deterministic synthetic parameters (no checkpoint load).
    conv_w = jax.random.normal(k_w, (Cout, Cin, 1, 1), jnp.float32) * 0.1
    gamma = 1.0 + 0.1 * jax.random.normal(k_g, (Cin,), jnp.float32)
    beta = 0.1 * jax.random.normal(k_b, (Cin,), jnp.float32)
    running_mean = 0.1 * jax.random.normal(k_m, (Cin,), jnp.float32)
    running_var = 1.0 + 0.1 * jax.random.uniform(k_v, (Cin,), jnp.float32)

    out = transition_forward(x, gamma, beta, running_mean, running_var, conv_w)
    out = jax.block_until_ready(out)

    ref = transition_reference(x, gamma, beta, running_mean, running_var, conv_w)
    assert out.shape == (N, Cout, H // 2, W // 2), out.shape
    # bf16 activation/weight (f32 accumulation) -> looser tolerance vs f32 ref.
    assert jnp.allclose(out, ref, atol=2e-2, rtol=2e-2), "mismatch vs reference"

    print("KERNEL_OK")
</pallas_src>

<mosaic_0001>
module attributes {stable_mosaic.version = 11 : i64} {
  func.func @transition_kernel(%arg0: i32, %arg1: i32, %arg2: memref<1x4x4x128xbf16, #tpu.memory_space<vmem>>, %arg3: memref<4x1xbf16, #tpu.memory_space<vmem>>, %arg4: memref<4x1xbf16, #tpu.memory_space<vmem>>, %arg5: memref<8x4xbf16, #tpu.memory_space<vmem>>, %arg6: memref<1x8x128xf32, #tpu.memory_space<vmem>>) attributes {dimension_semantics = [#tpu.dimension_semantics<parallel>, #tpu.dimension_semantics<parallel>], iteration_bounds = array<i64: 2, 1>, scalar_prefetch = 0 : i64, scratch_operands = 0 : i64, tpu.core_type = #tpu.core_type<tc>, window_params = [{transform_indices = @transform_0, window_bounds = array<i64: 1, 4, 4, 128>}, {pipeline_mode = #tpu.pipeline_mode<synchronous>, transform_indices = @transform_1, window_bounds = array<i64: 4, 1>}, {pipeline_mode = #tpu.pipeline_mode<synchronous>, transform_indices = @transform_2, window_bounds = array<i64: 4, 1>}, {pipeline_mode = #tpu.pipeline_mode<synchronous>, transform_indices = @transform_3, window_bounds = array<i64: 8, 4>}, {transform_indices = @transform_4, window_bounds = array<i64: 1, 8, 128>}]} {
    %c0 = arith.constant 0 : index
    %c0_0 = arith.constant 0 : index
    %0 = vector.load %arg3[%c0, %c0_0] : memref<4x1xbf16, #tpu.memory_space<vmem>>, vector<4x1xbf16>
    %1 = vector.shape_cast %0 : vector<4x1xbf16> to vector<4x1xbf16>
    %2 = vector.broadcast %1 : vector<4x1xbf16> to vector<4x128xbf16>
    %c0_1 = arith.constant 0 : index
    %c0_2 = arith.constant 0 : index
    %3 = vector.load %arg4[%c0_1, %c0_2] : memref<4x1xbf16, #tpu.memory_space<vmem>>, vector<4x1xbf16>
    %4 = vector.shape_cast %3 : vector<4x1xbf16> to vector<4x1xbf16>
    %5 = vector.broadcast %4 : vector<4x1xbf16> to vector<4x128xbf16>
    %c0_3 = arith.constant 0 : index
    %c0_4 = arith.constant 0 : index
    %c0_5 = arith.constant 0 : index
    %c0_6 = arith.constant 0 : index
    %6 = vector.load %arg2[%c0_3, %c0_4, %c0_5, %c0_6] : memref<1x4x4x128xbf16, #tpu.memory_space<vmem>>, vector<1x4x4x128xbf16>
    %7 = vector.shape_cast %6 : vector<1x4x4x128xbf16> to vector<4x4x128xbf16>
    %8 = vector.extract_strided_slice %7 {offsets = [0, 0, 0], sizes = [1, 4, 128], strides = [1, 1, 1]} : vector<4x4x128xbf16> to vector<1x4x128xbf16>
    %9 = vector.shape_cast %8 : vector<1x4x128xbf16> to vector<4x128xbf16>
    %10 = arith.mulf %9, %2 : vector<4x128xbf16>
    %11 = arith.addf %10, %5 : vector<4x128xbf16>
    %cst = arith.constant 0.000000e+00 : bf16
    %12 = vector.broadcast %cst : bf16 to vector<4x128xbf16>
    %13 = arith.maximumf %11, %12 : vector<4x128xbf16>
    %14 = vector.extract_strided_slice %7 {offsets = [1, 0, 0], sizes = [1, 4, 128], strides = [1, 1, 1]} : vector<4x4x128xbf16> to vector<1x4x128xbf16>
    %15 = vector.shape_cast %14 : vector<1x4x128xbf16> to vector<4x128xbf16>
    %16 = arith.mulf %15, %2 : vector<4x128xbf16>
    %17 = arith.addf %16, %5 : vector<4x128xbf16>
    %cst_7 = arith.constant 0.000000e+00 : bf16
    %18 = vector.broadcast %cst_7 : bf16 to vector<4x128xbf16>
    %19 = arith.maximumf %17, %18 : vector<4x128xbf16>
    %20 = arith.addf %13, %19 : vector<4x128xbf16>
    %21 = vector.extract_strided_slice %7 {offsets = [2, 0, 0], sizes = [1, 4, 128], strides = [1, 1, 1]} : vector<4x4x128xbf16> to vector<1x4x128xbf16>
    %22 = vector.shape_cast %21 : vector<1x4x128xbf16> to vector<4x128xbf16>
    %23 = arith.mulf %22, %2 : vector<4x128xbf16>
    %24 = arith.addf %23, %5 : vector<4x128xbf16>
    %cst_8 = arith.constant 0.000000e+00 : bf16
    %25 = vector.broadcast %cst_8 : bf16 to vector<4x128xbf16>
    %26 = arith.maximumf %24, %25 : vector<4x128xbf16>
    %27 = arith.addf %20, %26 : vector<4x128xbf16>
    %28 = vector.extract_strided_slice %7 {offsets = [3, 0, 0], sizes = [1, 4, 128], strides = [1, 1, 1]} : vector<4x4x128xbf16> to vector<1x4x128xbf16>
    %29 = vector.shape_cast %28 : vector<1x4x128xbf16> to vector<4x128xbf16>
    %30 = arith.mulf %29, %2 : vector<4x128xbf16>
    %31 = arith.addf %30, %5 : vector<4x128xbf16>
    %cst_9 = arith.constant 0.000000e+00 : bf16
    %32 = vector.broadcast %cst_9 : bf16 to vector<4x128xbf16>
    %33 = arith.maximumf %31, %32 : vector<4x128xbf16>
    %34 = arith.addf %27, %33 : vector<4x128xbf16>
    %c0_10 = arith.constant 0 : index
    %c0_11 = arith.constant 0 : index
    %35 = vector.load %arg5[%c0_10, %c0_11] : memref<8x4xbf16, #tpu.memory_space<vmem>>, vector<8x4xbf16>
    %cst_12 = arith.constant dense<0.000000e+00> : vector<8x128xf32>
    %36 = tpu.matmul %35, %34, %cst_12 {dimension_numbers = #tpu.dot_dimension_numbers<[1], [0], [0], [1], [0, 0, 1, 1], [], []>} : vector<8x4xbf16>, vector<4x128xbf16>, vector<8x128xf32> -> vector<8x128xf32>
    %c0_13 = arith.constant 0 : index
    %c0_14 = arith.constant 0 : index
    %c0_15 = arith.constant 0 : index
    %37 = vector.load %arg6[%c0_13, %c0_14, %c0_15] : memref<1x8x128xf32, #tpu.memory_space<vmem>>, vector<1x8x128xf32>
    %38 = vector.shape_cast %37 : vector<1x8x128xf32> to vector<8x128xf32>
    %39 = vector.shape_cast %36 : vector<8x128xf32> to vector<1x8x128xf32>
    tpu.vector_store %arg6[%c0_13, %c0_14, %c0_15], %39 {strides = array<i32>} : memref<1x8x128xf32, #tpu.memory_space<vmem>>, vector<1x8x128xf32>,
    return
  }
  func.func @transform_0(%arg0: i32, %arg1: i32) -> (i32, i32, i32, i32) {
    %c0_i32 = arith.constant 0 : i32
    %c0_i32_0 = arith.constant 0 : i32
    %c0_i32_1 = arith.constant 0 : i32
    return %arg0, %c0_i32, %c0_i32_0, %arg1 : i32, i32, i32, i32
  }
  func.func @transform_1(%arg0: i32, %arg1: i32) -> (i32, i32) {
    %c0_i32 = arith.constant 0 : i32
    %c0_i32_0 = arith.constant 0 : i32
    %c0_i32_1 = arith.constant 0 : i32
    return %c0_i32, %c0_i32_0 : i32, i32
  }
  func.func @transform_2(%arg0: i32, %arg1: i32) -> (i32, i32) {
    %c0_i32 = arith.constant 0 : i32
    %c0_i32_0 = arith.constant 0 : i32
    %c0_i32_1 = arith.constant 0 : i32
    return %c0_i32, %c0_i32_0 : i32, i32
  }
  func.func @transform_3(%arg0: i32, %arg1: i32) -> (i32, i32) {
    %c0_i32 = arith.constant 0 : i32
    %c0_i32_0 = arith.constant 0 : i32
    %c0_i32_1 = arith.constant 0 : i32
    return %c0_i32, %c0_i32_0 : i32, i32
  }
  func.func @transform_4(%arg0: i32, %arg1: i32) -> (i32, i32, i32) {
    %c0_i32 = arith.constant 0 : i32
    %c0_i32_0 = arith.constant 0 : i32
    return %arg0, %c0_i32, %arg1 : i32, i32, i32
  }
}

</mosaic_0001>

<llo_original>
// kernel: tpu_custom_call.1
$region0: #{tpu_custom_call.1}
  #allocation0 [shape = 'u32[]', space=smem, size = 0x4, offset = 0x4, fixed_abs, tag = 'smem constant byte address 0x4 - core index']
  #allocation1 [shape = 'u32[72,128]{1,0:T(1,128)}', space=vmem, size = 0x9000, scoped, tag = 'internal scratch']
  %s0 = inlined_call_operand.hbm [shape: bf16[2,4,4,128], index: 0, kind: input, shape index: {}]
  %s1 = inlined_call_operand.vmem [shape: bf16[4,1], index: 1, kind: input, shape index: {}]
  %s2 = inlined_call_operand.vmem [shape: bf16[4,1], index: 2, kind: input, shape index: {}]
  %s3 = inlined_call_operand.vmem [shape: bf16[8,4], index: 3, kind: input, shape index: {}]
  %s4 = inlined_call_operand.hbm [shape: f32[2,8,128], index: 4, kind: output, shape index: {}]
  %s5 = sld [smem:[#allocation0]]
  $region53: #{tpu_custom_call.1} parent=0
    _
  %s7 = ssub.s32 1, %s5
  %s8 = scalar_select 0, %s7, %s5
  $region1: #{tpu_custom_call.1} parent=0
    #allocation2 [shape = 'u8[8192]{0}', space=vmem, size = 0x2000, scoped, tag = 'input window, operand 0']
    #allocation3 [shape = 's32[2]{0}', space=sflag, size = 0x8, scoped, tag = 'scoped memory for tpu_custom_call.1']
    #allocation4 [shape = 's32[2]{0}', space=sflag, size = 0x8, scoped, tag = 'scoped memory for tpu_custom_call.1']
    #allocation5 [shape = 'u8[8192]{0}', space=vmem, size = 0x2000, scoped, tag = 'output window, operand 0']
    %9 = vsyncpa [#allocation3], 0
    %s10 = scalar_lea.sflag [#allocation3], 1
    %11 = vsyncpa %s10, 0
    %12 = vsyncpa [#allocation4], 0
    %s13 = scalar_lea.sflag [#allocation4], 1
    %14 = vsyncpa %s13, 0
    loop: start=0, step=1, limit=4
    $region2: #{tpu_custom_call.1} parent=1 // loop_pre_header
      _
    $region3: #{tpu_custom_call.1} parent=1 // loop_header
      %s16 = sphi 0, %s20
      %p17 = scmp.ge.s32.totalorder %s16, 4
      %s23 = sphi 0, %s35
      %s24 = sphi 0, %s31
      %s25 = sphi 0, %s23
      %s26 = sphi 0, %s24
      %s27 = sphi 0, %s25
      %s28 = sphi 0, %s26
      %s40 = sphi 0, %s42
      %s43 = sphi 0, %s40
      %s44 = sphi 0, %s43
      %s60 = sphi 0, %s44
      %s64 = sphi 0, %s64
      %s66 = sphi 0, %s64
      %s67 = sphi 0, %s66
      %s81 = sphi 0, %s67
      %s85 = sphi 0, %s85
      %s87 = sphi 0, %s85
      %s88 = sphi 0, %s87
      %s102 = sphi 0, %s88
      %s106 = sphi 0, %s106
      %s108 = sphi 0, %s106
      %s109 = sphi 0, %s108
      %s123 = sphi 0, %s109
      %s131 = sphi 0, %s133
      %s134 = sphi 0, %s131
      %s135 = sphi 0, %s134
      %s151 = sphi 0, %s135
    $region4: #{tpu_custom_call.1} parent=1 // loop_header_branch
      %19 = sbr.rel (%p17) target = $region8
    $region5: #{tpu_custom_call.1} parent=1 // loop_body
      %s21 = ssub.s32 %s16, 1
      %s22 = ssub.s32 %s16, 2
      %s29 = sadd.s32 1, %s24
      %p30 = scmp.ge.s32.totalorder %s29, 1
      %s31 = scalar_select %p30, 0, %s29
      %s32 = sadd.s32 1, %s23
      %s33 = scalar_select %p30, %s32, %s23
      %p34 = scmp.ge.s32.totalorder %s33, 2
      %s35 = scalar_select %p34, 0, %s33
      %s36 = ssub.s32 %s23, %s35
      %s37 = ssub.s32 %s24, %s31
      %s38 = sor.u32 %s36, %s37
      %p39 = scmp.eq.s32.totalorder %s38, 0
      %s41 = sadd.s32 %s40, 1
      %s42 = scalar_select %p39, %s40, %s41
      %p45 = pneg %p39
      %p46 = scmp.eq.s32.totalorder %s16, 1
      %p47 = por %p45, %p46
      %p48 = scmp.ne.s32.totalorder %s40, %s43
      %p49 = scmp.eq.s32.totalorder %s16, 0
      %p50 = por %p48, %p49
      %p51 = scmp.ne.s32.totalorder %s40, %s43
      %p52 = scmp.eq.s32.totalorder %s21, 1
      %p53 = por %p51, %p52
      %p54 = scmp.ne.s32.totalorder %s43, %s44
      %p55 = scmp.eq.s32.totalorder %s21, 0
      %p56 = por %p54, %p55
      %p57 = scmp.ne.s32.totalorder %s43, %s44
      %p58 = scmp.eq.s32.totalorder %s22, 1
      %p59 = por %p57, %p58
      %p61 = scmp.ne.s32.totalorder %s44, %s60
      %p62 = scmp.eq.s32.totalorder %s22, 0
      %p63 = por %p61, %p62
      %s65 = sadd.s32 %s64, 1
      %p68 = scmp.eq.s32.totalorder %s16, 1
      %p69 = scmp.ne.s32.totalorder %s64, %s66
      %p70 = scmp.eq.s32.totalorder %s16, 0
      %p71 = por %p69, %p70
      %p72 = scmp.ne.s32.totalorder %s64, %s66
      %p73 = scmp.eq.s32.totalorder %s21, 1
      %p74 = por %p72, %p73
      %p75 = scmp.ne.s32.totalorder %s66, %s67
      %p76 = scmp.eq.s32.totalorder %s21, 0
      %p77 = por %p75, %p76
      %p78 = scmp.ne.s32.totalorder %s66, %s67
      %p79 = scmp.eq.s32.totalorder %s22, 1
      %p80 = por %p78, %p79
      %p82 = scmp.ne.s32.totalorder %s67, %s81
      %p83 = scmp.eq.s32.totalorder %s22, 0
      %p84 = por %p82, %p83
      %s86 = sadd.s32 %s85, 1
      %p89 = scmp.eq.s32.totalorder %s16, 1
      %p90 = scmp.ne.s32.totalorder %s85, %s87
      %p91 = scmp.eq.s32.totalorder %s16, 0
      %p92 = por %p90, %p91
      %p93 = scmp.ne.s32.totalorder %s85, %s87
      %p94 = scmp.eq.s32.totalorder %s21, 1
      %p95 = por %p93, %p94
      %p96 = scmp.ne.s32.totalorder %s87, %s88
      %p97 = scmp.eq.s32.totalorder %s21, 0
      %p98 = por %p96, %p97
      %p99 = scmp.ne.s32.totalorder %s87, %s88
      %p100 = scmp.eq.s32.totalorder %s22, 1
      %p101 = por %p99, %p100
      %p103 = scmp.ne.s32.totalorder %s88, %s102
      %p104 = scmp.eq.s32.totalorder %s22, 0
      %p105 = por %p103, %p104
      %s107 = sadd.s32 %s106, 1
      %p110 = scmp.eq.s32.totalorder %s16, 1
      %p111 = scmp.ne.s32.totalorder %s106, %s108
      %p112 = scmp.eq.s32.totalorder %s16, 0
      %p113 = por %p111, %p112
      %p114 = scmp.ne.s32.totalorder %s106, %s108
      %p115 = scmp.eq.s32.totalorder %s21, 1
      %p116 = por %p114, %p115
      %p117 = scmp.ne.s32.totalorder %s108, %s109
      %p118 = scmp.eq.s32.totalorder %s21, 0
      %p119 = por %p117, %p118
      %p120 = scmp.ne.s32.totalorder %s108, %s109
      %p121 = scmp.eq.s32.totalorder %s22, 1
      %p122 = por %p120, %p121
      %p124 = scmp.ne.s32.totalorder %s109, %s123
      %p125 = scmp.eq.s32.totalorder %s22, 0
      %p126 = por %p124, %p125
      %s127 = ssub.s32 %s23, %s35
      %s128 = ssub.s32 %s24, %s31
      %s129 = sor.u32 %s127, %s128
      %p130 = scmp.eq.s32.totalorder %s129, 0
      %s132 = sadd.s32 %s131, 1
      %s133 = scalar_select %p130, %s131, %s132
      %p136 = pneg %p130
      %p137 = scmp.eq.s32.totalorder %s16, 1
      %p138 = por %p136, %p137
      %p139 = scmp.ne.s32.totalorder %s131, %s134
      %p140 = scmp.eq.s32.totalorder %s16, 0
      %p141 = por %p139, %p140
      %p142 = scmp.ne.s32.totalorder %s131, %s134
      %p143 = scmp.eq.s32.totalorder %s21, 1
      %p144 = por %p142, %p143
      %p145 = scmp.ne.s32.totalorder %s134, %s135
      %p146 = scmp.eq.s32.totalorder %s21, 0
      %p147 = por %p145, %p146
      %p148 = scmp.ne.s32.totalorder %s134, %s135
      %p149 = scmp.eq.s32.totalorder %s22, 1
      %p150 = por %p148, %p149
      %p152 = scmp.ne.s32.totalorder %s135, %s151
      %p153 = scmp.eq.s32.totalorder %s22, 0
      %p154 = por %p152, %p153
      %p155 = scmp.le.s32.totalorder 1, %s16
      %p156 = scmp.lt.s32.totalorder %s16, 3
      %p157 = pnand %p155, %p156
      %p158 = pneg %p157
      // Predicated region
      $region9: #{tpu_custom_call.1} parent=5 // pred_check
        _
      $region10: #{tpu_custom_call.1} parent=5 // pred_check_branch
        %160 = sbr.rel (%p157) target = $region12
      $region11: #{tpu_custom_call.1} parent=5 // pred_region
        %s161 = ssub.s32 %s16, 1
        // Predicated region
        $region13: #{tpu_custom_call.1} parent=11 // pred_check
          %p162 = pneg %p77
        $region14: #{tpu_custom_call.1} parent=11 // pred_check_branch
          %164 = sbr.rel (%p162) target = $region16
        $region15: #{tpu_custom_call.1} parent=11 // pred_region
          _
        $region16: #{tpu_custom_call.1} parent=11 // pred_fallthru
          _
        // Predicated region
        $region17: #{tpu_custom_call.1} parent=11 // pred_check
          %p165 = pneg %p98
        $region18: #{tpu_custom_call.1} parent=11 // pred_check_branch
          %167 = sbr.rel (%p165) target = $region20
        $region19: #{tpu_custom_call.1} parent=11 // pred_region
          _
        $region20: #{tpu_custom_call.1} parent=11 // pred_fallthru
          _
        // Predicated region
        $region21: #{tpu_custom_call.1} parent=11 // pred_check
          %p168 = pneg %p119
        $region22: #{tpu_custom_call.1} parent=11 // pred_check_branch
          %170 = sbr.rel (%p168) target = $region24
        $region23: #{tpu_custom_call.1} parent=11 // pred_region
          _
        $region24: #{tpu_custom_call.1} parent=11 // pred_fallthru
          _
      $region12: #{tpu_custom_call.1} parent=5 // pred_fallthru
        _
      %p171 = scmp.lt.s32.totalorder %s16, 2
      // Predicated region
      $region25: #{tpu_custom_call.1} parent=5 // pred_check
        %p172 = pneg %p171
      $region26: #{tpu_custom_call.1} parent=5 // pred_check_branch
        %174 = sbr.rel (%p172) target = $region28
      $region27: #{tpu_custom_call.1} parent=5 // pred_region
        // Predicated region
        $region29: #{tpu_custom_call.1} parent=27 // pred_check
          %p175 = pneg %p50
        $region30: #{tpu_custom_call.1} parent=27 // pred_check_branch
          %177 = sbr.rel (%p175) target = $region32
        $region31: #{tpu_custom_call.1} parent=27 // pred_region
          %s178 = sand.u32 %s40, 1
          %s179 = scalar_lea.sflag [#allocation3], %s178
          %s180 = sand.u32 %s40, 1
          %s181 = smul.addr %s180, 8
          %s182 = scalar_lea.vmem [#allocation2], %s181
          %184 = vsyncadd %s179, 0
          %s185 = smul.addr %s23, 4
          %s186 = sadd.s32 %s24, %s185
          %s187 = smul.addr %s186, 2
          %s188 = scalar_lea.hbm %s0, %s187
          %s189 = sshll.u32 %s188, 4
          %s190 = int_to_ptr.hbm [resolvable:$true] %s189
          %s191 = sshll.u32 %s182, 4
          %s192 = int_to_ptr.vmem [resolvable:$true] %s191
          %197 = dma.hbm_to_vmem [thread:$0]  %s190, 128, %s192, %s179, 32, 32, 2
        $region32: #{tpu_custom_call.1} parent=27 // pred_fallthru
          _
      $region28: #{tpu_custom_call.1} parent=5 // pred_fallthru
        _
      %p198 = scmp.le.s32.totalorder 1, %s16
      %p199 = scmp.lt.s32.totalorder %s16, 3
      %p200 = pnand %p198, %p199
      %p201 = pneg %p200
      // Predicated region
      $region33: #{tpu_custom_call.1} parent=5 // pred_check
        _
      $region34: #{tpu_custom_call.1} parent=5 // pred_check_branch
        %203 = sbr.rel (%p200) target = $region36
      $region35: #{tpu_custom_call.1} parent=5 // pred_region
        %s204 = ssub.s32 %s16, 1
        %s205 = sand.u32 %s43, 1
        %s206 = scalar_lea.sflag [#allocation3], %s205
        %s207 = sand.u32 %s43, 1
        %s208 = smul.addr %s207, 8
        %s209 = scalar_lea.vmem [#allocation2], %s208
        // Predicated region
        $region37: #{tpu_custom_call.1} parent=35 // pred_check
          %p210 = pneg %p56
        $region38: #{tpu_custom_call.1} parent=35 // pred_check_branch
          %212 = sbr.rel (%p210) target = $region40
        $region39: #{tpu_custom_call.1} parent=35 // pred_region
          %214 = dma.done %s206, 128
        $region40: #{tpu_custom_call.1} parent=35 // pred_fallthru
          _
        %s215 = sand.u32 %s43, 1
        %s216 = scalar_lea.sflag [#allocation3], %s215
        %s217 = sand.u32 %s43, 1
        %s218 = smul.addr %s217, 8
        %s219 = scalar_lea.vmem [#allocation2], %s218
        %p220 = pneg %p56
        %p221 = pneg %p53
        %p222 = pneg %p77
        %p223 = pneg %p74
        %p224 = pneg %p98
        %p225 = pneg %p95
        %p226 = pneg %p119
        %p227 = pneg %p116
        %p228 = pneg %p147
        %p229 = pneg %p144
        %s230 = sand.u32 %s134, 1
        %s231 = scalar_lea.sflag [#allocation4], %s230
        %s232 = sand.u32 %s134, 1
        %s233 = smul.addr %s232, 8
        %s234 = scalar_lea.vmem [#allocation5], %s233
        %v236 = vld [vmem:[%s1] sm:$0x3]
        %238 = vset.pattern.permute.xlu0 0
        %239 = vperm.xlu0 %238, %v236
        %v240 = vpop.permute.xlu0 %239
        %v243 = vunpack.c.l.s4 269488144
        %v244 = vunpack.c.0.s8 %v243
        %v245 = vperm.slane %v240, %v244
        %v246 = vld [vmem:[%s2] sm:$0x3]
        %248 = vset.pattern.permute.xlu0 0
        %249 = vperm.xlu0 %248, %v246
        %v250 = vpop.permute.xlu0 %249
        %v253 = vunpack.c.l.s4 269488144
        %v254 = vunpack.c.0.s8 %v253
        %v255 = vperm.slane %v250, %v254
        %v256 = vld [vmem:[%s209] sm:$0x3]
        %v257 = vld [vmem:[%s209 + $0x2] sm:$0x3]
        %v258 = vld [vmem:[%s209 + $0x4] sm:$0x3]
        %v259 = vld [vmem:[%s209 + $0x6] sm:$0x3]
        %v260 = vunpack.c.l.bf16 %v256
        %v261 = vunpack.c.l.bf16 %v245
        %v262 = vmul.f32 %v260, %v261
        %v263 = vpack.c.bf16 %v262, %v262
        %v264 = vunpack.c.l.bf16 %v263
        %v265 = vunpack.c.l.bf16 %v255
        %v266 = vadd.f32 %v264, %v265
        %v267 = vpack.c.bf16 %v266, %v266
        %v268 = vunpack.c.l.bf16 %v267
        %v269 = vmax.f32 %v268, 0.0
        %v270 = vpack.c.bf16 %v269, %v269
        %v271 = vunpack.c.l.bf16 %v257
        %v272 = vmul.f32 %v271, %v261
        %v273 = vpack.c.bf16 %v272, %v272
        %v274 = vunpack.c.l.bf16 %v273
        %v275 = vadd.f32 %v274, %v265
        %v276 = vpack.c.bf16 %v275, %v275
        %v277 = vunpack.c.l.bf16 %v276
        %v278 = vmax.f32 %v277, 0.0
        %v279 = vpack.c.bf16 %v278, %v278
        %v280 = vunpack.c.l.bf16 %v270
        %v281 = vunpack.c.l.bf16 %v279
        %v282 = vadd.f32 %v280, %v281
        %v283 = vpack.c.bf16 %v282, %v282
        %v284 = vunpack.c.l.bf16 %v258
        %v285 = vmul.f32 %v284, %v261
        %v286 = vpack.c.bf16 %v285, %v285
        %v287 = vunpack.c.l.bf16 %v286
        %v288 = vadd.f32 %v287, %v265
        %v289 = vpack.c.bf16 %v288, %v288
        %v290 = vunpack.c.l.bf16 %v289
        %v291 = vmax.f32 %v290, 0.0
        %v292 = vpack.c.bf16 %v291, %v291
        %v293 = vunpack.c.l.bf16 %v283
        %v294 = vunpack.c.l.bf16 %v292
        %v295 = vadd.f32 %v293, %v294
        %v296 = vpack.c.bf16 %v295, %v295
        %v297 = vunpack.c.l.bf16 %v259
        %v298 = vmul.f32 %v297, %v261
        %v299 = vpack.c.bf16 %v298, %v298
        %v300 = vunpack.c.l.bf16 %v299
        %v301 = vadd.f32 %v300, %v265
        %v302 = vpack.c.bf16 %v301, %v301
        %v303 = vunpack.c.l.bf16 %v302
        %v304 = vmax.f32 %v303, 0.0
        %v305 = vpack.c.bf16 %v304, %v304
        %v306 = vunpack.c.l.bf16 %v296
        %v307 = vunpack.c.l.bf16 %v305
        %v308 = vadd.f32 %v306, %v307
        %v309 = vpack.c.bf16 %v308, %v308
        %v310 = vld [vmem:[%s3] sm:$0xf]
        %vm311 = vcmask 31744
        %v313 = vsel %vm311, %v310, 0
        %vm315 = vcmask 1041408
        %v317 = vsel %vm315, %v309, 0
        %319 = vmatpush.bf16.msra.mxu0 0
        %320 = vmatpush.bf16.msra.mxu0 0
        %321 = vmatpush.bf16.msra.mxu0 0
        %322 = vmatpush.bf16.msra.mxu0 0
        %323 = vmatpush.bf16.msra.mxu0 0
        %324 = vmatpush.bf16.msra.mxu0 0
        %325 = vmatpush.bf16.msra.mxu0 0
        %326 = vmatpush.bf16.msra.mxu0 %v317
        %327 = vmatmul.bf16.gmra.mxu0 %v313
        %v328 = vpop.f32.mrf.mxu0
        %v329 = vadd.f32 0.0, %v328
        %v330 = vpop.f32.mrf.mxu0
        %331 = vdwg.mxu0
        %332 = vst [vmem:[%s234] sm:$0xff] %v329
        %s333 = sand.u32 %s134, 1
        %s334 = scalar_lea.sflag [#allocation4], %s333
        %s335 = sand.u32 %s134, 1
        %s336 = smul.addr %s335, 8
        %s337 = scalar_lea.vmem [#allocation5], %s336
        // Predicated region
        $region41: #{tpu_custom_call.1} parent=35 // pred_check
          %p338 = pneg %p144
        $region42: #{tpu_custom_call.1} parent=35 // pred_check_branch
          %340 = sbr.rel (%p338) target = $region44
        $region43: #{tpu_custom_call.1} parent=35 // pred_region
          %342 = vsyncadd %s334, 0
          %s343 = sadd.s32 %s26, %s25
          %s344 = smul.addr %s343, 8
          %s345 = scalar_lea.hbm %s4, %s344
          %s347 = sshll.u32 %s337, 4
          %s348 = int_to_ptr.vmem [resolvable:$true] %s347
          %s349 = sshll.u32 %s345, 4
          %s350 = int_to_ptr.hbm [resolvable:$true] %s349
          %352 = dma.vmem_to_hbm [thread:$0]  %s348, 128, %s350, %s334
        $region44: #{tpu_custom_call.1} parent=35 // pred_fallthru
          _
      $region36: #{tpu_custom_call.1} parent=5 // pred_fallthru
        _
      %p353 = scmp.le.s32.totalorder 2, %s16
      // Predicated region
      $region45: #{tpu_custom_call.1} parent=5 // pred_check
        %p354 = pneg %p353
      $region46: #{tpu_custom_call.1} parent=5 // pred_check_branch
        %356 = sbr.rel (%p354) target = $region48
      $region47: #{tpu_custom_call.1} parent=5 // pred_region
        %s357 = ssub.s32 %s16, 2
        // Predicated region
        $region49: #{tpu_custom_call.1} parent=47 // pred_check
          %p358 = pneg %p150
        $region50: #{tpu_custom_call.1} parent=47 // pred_check_branch
          %360 = sbr.rel (%p358) target = $region52
        $region51: #{tpu_custom_call.1} parent=47 // pred_region
          %s361 = sand.u32 %s135, 1
          %s362 = scalar_lea.sflag [#allocation4], %s361
          %s363 = sand.u32 %s135, 1
          %s364 = smul.addr %s363, 8
          %s365 = scalar_lea.vmem [#allocation5], %s364
          %367 = dma.done %s362, 128
        $region52: #{tpu_custom_call.1} parent=47 // pred_fallthru
          _
      $region48: #{tpu_custom_call.1} parent=5 // pred_fallthru
        _
    $region6: #{tpu_custom_call.1} parent=1 // loop_footer
      %s20 = sadd.s32 1, %s16
    $region7: #{tpu_custom_call.1} parent=1 // loop_footer_branch
      %15 = sbr.rel target = $region3
    $region8: #{tpu_custom_call.1} parent=1 // loop_exit
      _
    %368 = vsyncpa [#allocation3], 1
    %s369 = scalar_lea.sflag [#allocation3], 1
    %370 = vsyncpa %s369, 1
    %371 = vsyncpa [#allocation4], 1
    %s372 = scalar_lea.sflag [#allocation4], 1
    %373 = vsyncpa %s372, 1

</llo_original>
